<compile_context>
chip_gen: v7x
topology: tpu7x:2x2x1
jax: 0.10.0
libtpu: 0.0.40
codegen_flags: <defaults>
</compile_context>

<pallas_src>
import functools

import numpy as np
import jax
import jax.numpy as jnp
from jax import lax
from jax.experimental import pallas as pl
from jax.experimental.pallas import tpu as pltpu


def _round_up(a, b):
    return (a + b - 1) // b * b


def _fta_kernel(x_ref, e_ref, c_ref, o_ref, *, sub_rows, half_delta, eta):
    e = e_ref[...]                       # (3*d, d*tiles) bf16 one-hot selector (x3)
    c_mid = c_ref[...]                   # (1, d*tiles) f32 tile centers (c + delta/2)
    thr = half_delta + eta
    peak = 1.0 + half_delta

    def compute(x):
        # Exact f32 -> 3x bf16 split (8 + 8 + 8 mantissa bits cover f32's 24),
        # done on the narrow (rows, d) slab so its VPU cost is ~1/tiles per output.
        hi = x.astype(jnp.bfloat16)
        r = x - hi.astype(jnp.float32)
        mid = r.astype(jnp.bfloat16)
        lo = (r - mid.astype(jnp.float32)).astype(jnp.bfloat16)
        x3 = jnp.concatenate([hi, mid, lo], axis=1)                  # (rows, 3*d) bf16
        # One bf16 MXU pass; f32 accumulation over K recovers x exactly and
        # replicates it across each feature's `tiles` consecutive lanes.
        xb = jnp.dot(x3, e, preferred_element_type=jnp.float32)      # (rows, d*tiles)
        # s = relu(c - x) + relu(x - delta - c) == max(|x - c_mid| - delta/2, 0)
        # out = where(s <= eta, 1 - s, 0)
        #     == where(a <= delta/2 + eta, min(1, (1 + delta/2) - a), 0)
        a = jnp.abs(xb - c_mid)
        val = jnp.minimum(peak - a, 1.0)
        return jnp.where(a <= thr, val, 0.0).astype(o_ref.dtype)

    n_sub = o_ref.shape[0] // sub_rows
    if n_sub <= 1:
        o_ref[...] = compute(x_ref[...])
    else:
        def body(i, carry):
            r0 = pl.multiple_of(i * sub_rows, sub_rows)
            o_ref[pl.ds(r0, sub_rows), :] = compute(x_ref[pl.ds(r0, sub_rows), :])
            return carry
        lax.fori_loop(0, n_sub, body, 0)


def fta_forward(reps, *, tiles=20, bound_low=-2.0, bound_high=2.0, eta=0.2,
                block_rows=4096, out_dtype=jnp.float32):
    """FTA forward. reps: (..., d); returns (prod(leading dims), d * tiles)."""
    d = reps.shape[-1]
    dt = d * tiles
    delta = (bound_high - bound_low) / tiles

    x = jnp.reshape(reps, (-1, d)).astype(jnp.float32)    # (n, d)
    n = x.shape[0]

    out_isize = jnp.dtype(out_dtype).itemsize
    row_align = max(8, 32 // out_isize)          # sublane packing: 8 f32, 16 bf16

    # Row-block: >=2 grid steps whenever possible (v7x dual TensorCore), rows a
    # multiple of the sublane packing, and a multiple of the inner sub-slab size
    # so the in-kernel strip-mine divides evenly.
    sub_cap = 512
    bn = min(int(block_rows), _round_up(max((n + 1) // 2, 1), row_align))
    bn = max(row_align, (bn // row_align) * row_align)
    if bn > sub_cap:
        bn = _round_up(bn, sub_cap)
        sub = sub_cap
    else:
        sub = bn
    grid = pl.cdiv(n, bn)   # ragged last block: OOB rows ignored on writeback

    # Constant operands; constant index_map keeps them resident across grid steps.
    c = np.arange(tiles, dtype=np.float64) * delta + bound_low
    c_mid = (c + delta / 2.0).astype(np.float32)
    c_row = jnp.asarray(np.tile(c_mid, d)[None, :])                        # (1, dt) f32
    e_one = np.repeat(np.eye(d, dtype=np.float32), tiles, axis=1)          # (d, dt) 0/1
    e_sel3 = jnp.asarray(np.tile(e_one, (3, 1)), dtype=jnp.bfloat16)       # (3d, dt) bf16 exact

    # Explicit VMEM budget: double-buffered I/O blocks + per-sub-slab temporaries.
    io_bytes = (2 * bn * d * 4) + (2 * bn * dt * out_isize) + (2 * 3 * d * dt * 2) + (2 * dt * 4)
    scratch_bytes = 10 * sub * dt * 4 + 12 * sub * d * 4
    vmem_limit = int(max(32 << 20, min(110 << 20, io_bytes + scratch_bytes + (4 << 20))))

    kernel = functools.partial(_fta_kernel, sub_rows=sub,
                               half_delta=float(delta) / 2.0, eta=float(eta))

    out = pl.pallas_call(
        kernel,
        out_shape=jax.ShapeDtypeStruct((n, dt), out_dtype),
        grid_spec=pltpu.PrefetchScalarGridSpec(
            num_scalar_prefetch=0,
            grid=(grid,),
            in_specs=[
                pl.BlockSpec((bn, d), lambda i: (i, 0)),      # x rows
                pl.BlockSpec((3 * d, dt), lambda i: (0, 0)),  # one-hot selector (resident)
                pl.BlockSpec((1, dt), lambda i: (0, 0)),      # tile centers (resident)
            ],
            out_specs=pl.BlockSpec((bn, dt), lambda i: (i, 0)),
        ),
        compiler_params=pltpu.CompilerParams(
            dimension_semantics=("parallel",),
            vmem_limit_bytes=vmem_limit,
        ),
    )(x, e_sel3, c_row)
    return out   # (n, d*tiles), matching torch's row-major reshape


def fta_reference(reps, *, tiles=20, bound_low=-2.0, bound_high=2.0, eta=0.2):
    """Pure-JAX reference mirroring the PyTorch module."""
    d = reps.shape[-1]
    delta = (bound_high - bound_low) / tiles
    c = jnp.asarray((np.arange(tiles, dtype=np.float64) * delta + bound_low)
                    .astype(np.float32))
    x = jnp.reshape(reps, (-1, d, 1)).astype(jnp.float32)
    s = jax.nn.relu(c - x) + jax.nn.relu(x - delta - c)
    act = jnp.where(s <= eta, s, 1.0) if eta != 0.0 else jnp.sign(s)
    return jnp.reshape(1.0 - act, (-1, d * tiles))


if __name__ == "__main__":
    key = jax.random.PRNGKey(0)
    k0, k1, k2, k3 = jax.random.split(key, 4)
    d, tiles = 32, 20

    def make_input(k, shape):
        # Quantize inputs to (k/1000 + 1/2000): every value stays >= ~5e-4 away from
        # the FTA decision boundaries (multiples of delta = 0.2), so sub-ulp fp
        # differences between the fused kernel math and the reference cannot flip
        # the (s <= eta) select right at a bin edge.
        u = jax.random.uniform(k, shape, jnp.float32, minval=-2.5, maxval=2.5)
        return jnp.round(u * 1000.0) / 1000.0 + 0.0005

    # Case 1: tiny batch -> single grid step, single inner sub-slab.
    reps = make_input(k0, (8, d))
    out = jax.block_until_ready(fta_forward(reps, tiles=tiles))
    ref = fta_reference(reps, tiles=tiles)
    assert out.shape == (8, d * tiles), out.shape
    assert jnp.allclose(out, ref, atol=1e-5, rtol=1e-5), \
        float(jnp.max(jnp.abs(out - ref)))

    # Case 2: ragged batch with a small row block -> multi-step grid + partial block.
    reps2 = make_input(k1, (40, d))
    out2 = jax.block_until_ready(fta_forward(reps2, tiles=tiles, block_rows=16))
    ref2 = fta_reference(reps2, tiles=tiles)
    assert out2.shape == (40, d * tiles), out2.shape
    assert jnp.allclose(out2, ref2, atol=1e-5, rtol=1e-5), \
        float(jnp.max(jnp.abs(out2 - ref2)))

    # Case 3: exercises the in-kernel strip-mine loop (bn=1024, sub=512) plus a
    # ragged final grid block.
    reps3 = make_input(k2, (1200, d))
    out3 = jax.block_until_ready(fta_forward(reps3, tiles=tiles, block_rows=1024))
    ref3 = fta_reference(reps3, tiles=tiles)
    assert out3.shape == (1200, d * tiles), out3.shape
    assert jnp.allclose(out3, ref3, atol=1e-5, rtol=1e-5), \
        float(jnp.max(jnp.abs(out3 - ref3)))

    # Case 4: optional bf16 output (halves the dominant HBM write traffic on the
    # write-bound v5e/v6e); loose tolerance covers the bf16 rounding of (1 - s).
    reps4 = make_input(k3, (64, d))
    out4 = jax.block_until_ready(
        fta_forward(reps4, tiles=tiles, out_dtype=jnp.bfloat16))
    ref4 = fta_reference(reps4, tiles=tiles)
    assert out4.shape == (64, d * tiles), out4.shape
    assert jnp.allclose(out4.astype(jnp.float32), ref4, atol=8e-3, rtol=8e-3), \
        float(jnp.max(jnp.abs(out4.astype(jnp.float32) - ref4)))

    print("KERNEL_OK")
</pallas_src>

<mosaic_0001>
module attributes {stable_mosaic.version = 11 : i64} {
  func.func @_fta_kernel(%arg0: i32, %arg1: memref<8x32xf32, #tpu.memory_space<vmem>>, %arg2: memref<96x640xbf16, #tpu.memory_space<vmem>>, %arg3: memref<1x640xf32, #tpu.memory_space<vmem>>, %arg4: memref<8x640xf32, #tpu.memory_space<vmem>>) attributes {dimension_semantics = [#tpu.dimension_semantics<parallel>], iteration_bounds = array<i64: 1>, scalar_prefetch = 0 : i64, scratch_operands = 0 : i64, tpu.core_type = #tpu.core_type<tc>, window_params = [{transform_indices = @transform_0, window_bounds = array<i64: 8, 32>}, {pipeline_mode = #tpu.pipeline_mode<synchronous>, transform_indices = @transform_1, window_bounds = array<i64: 96, 640>}, {pipeline_mode = #tpu.pipeline_mode<synchronous>, transform_indices = @transform_2, window_bounds = array<i64: 1, 640>}, {transform_indices = @transform_3, window_bounds = array<i64: 8, 640>}]} {
    %c0 = arith.constant 0 : index
    %c0_0 = arith.constant 0 : index
    %0 = vector.load %arg2[%c0, %c0_0] : memref<96x640xbf16, #tpu.memory_space<vmem>>, vector<96x640xbf16>
    %c0_1 = arith.constant 0 : index
    %c0_2 = arith.constant 0 : index
    %1 = vector.load %arg3[%c0_1, %c0_2] : memref<1x640xf32, #tpu.memory_space<vmem>>, vector<1x640xf32>
    %c0_3 = arith.constant 0 : index
    %c0_4 = arith.constant 0 : index
    %2 = vector.load %arg1[%c0_3, %c0_4] : memref<8x32xf32, #tpu.memory_space<vmem>>, vector<8x32xf32>
    %3 = arith.truncf %2 : vector<8x32xf32> to vector<8x32xbf16>
    %4 = arith.extf %3 : vector<8x32xbf16> to vector<8x32xf32>
    %5 = arith.subf %2, %4 : vector<8x32xf32>
    %6 = arith.truncf %5 : vector<8x32xf32> to vector<8x32xbf16>
    %7 = arith.extf %6 : vector<8x32xbf16> to vector<8x32xf32>
    %8 = arith.subf %5, %7 : vector<8x32xf32>
    %9 = arith.truncf %8 : vector<8x32xf32> to vector<8x32xbf16>
    %10 = tpu.concatenate %3, %6, %9 in 1 : vector<8x32xbf16>, vector<8x32xbf16>, vector<8x32xbf16> -> vector<8x96xbf16>
    %cst = arith.constant dense<0.000000e+00> : vector<8x640xf32>
    %11 = tpu.matmul %10, %0, %cst {dimension_numbers = #tpu.dot_dimension_numbers<[1], [0], [0], [1], [0, 0, 1, 1], [], []>} : vector<8x96xbf16>, vector<96x640xbf16>, vector<8x640xf32> -> vector<8x640xf32>
    %12 = vector.broadcast %1 : vector<1x640xf32> to vector<8x640xf32>
    %13 = arith.subf %11, %12 : vector<8x640xf32>
    %14 = math.absf %13 : vector<8x640xf32>
    %cst_5 = arith.constant 1.100000e+00 : f32
    %15 = vector.broadcast %cst_5 : f32 to vector<8x640xf32>
    %16 = arith.subf %15, %14 : vector<8x640xf32>
    %cst_6 = arith.constant 1.000000e+00 : f32
    %17 = vector.broadcast %cst_6 : f32 to vector<8x640xf32>
    %18 = arith.minimumf %16, %17 : vector<8x640xf32>
    %cst_7 = arith.constant 3.000000e-01 : f32
    %19 = vector.broadcast %cst_7 : f32 to vector<8x640xf32>
    %20 = arith.cmpf ole, %14, %19 : vector<8x640xf32>
    %cst_8 = arith.constant 0.000000e+00 : f32
    %21 = vector.broadcast %cst_8 : f32 to vector<8x640xf32>
    %22 = arith.select %20, %18, %21 : vector<8x640xi1>, vector<8x640xf32>
    %c0_9 = arith.constant 0 : index
    %c0_10 = arith.constant 0 : index
    %23 = vector.load %arg4[%c0_9, %c0_10] : memref<8x640xf32, #tpu.memory_space<vmem>>, vector<8x640xf32>
    tpu.vector_store %arg4[%c0_9, %c0_10], %22 {strides = array<i32>} : memref<8x640xf32, #tpu.memory_space<vmem>>, vector<8x640xf32>,
    return
  }
  func.func @transform_0(%arg0: i32) -> (i32, i32) {
    %c0_i32 = arith.constant 0 : i32
    %c0_i32_0 = arith.constant 0 : i32
    return %arg0, %c0_i32 : i32, i32
  }
  func.func @transform_1(%arg0: i32) -> (i32, i32) {
    %c0_i32 = arith.constant 0 : i32
    %c0_i32_0 = arith.constant 0 : i32
    %c0_i32_1 = arith.constant 0 : i32
    return %c0_i32, %c0_i32_0 : i32, i32
  }
  func.func @transform_2(%arg0: i32) -> (i32, i32) {
    %c0_i32 = arith.constant 0 : i32
    %c0_i32_0 = arith.constant 0 : i32
    %c0_i32_1 = arith.constant 0 : i32
    return %c0_i32, %c0_i32_0 : i32, i32
  }
  func.func @transform_3(%arg0: i32) -> (i32, i32) {
    %c0_i32 = arith.constant 0 : i32
    %c0_i32_0 = arith.constant 0 : i32
    return %arg0, %c0_i32 : i32, i32
  }
}

</mosaic_0001>

<llo_original>
// kernel: tpu_custom_call.1
$region0: #{tpu_custom_call.1}
  #allocation0 [shape = 'u32[]', space=smem, size = 0x4, offset = 0x4, fixed_abs, tag = 'smem constant byte address 0x4 - core index']
  #allocation1 [shape = 'u32[144,128]{1,0:T(1,128)}', space=vmem, size = 0x12000, scoped, tag = 'internal scratch']
  %s0 = inlined_call_operand.hbm [shape: f32[8,32], index: 0, kind: input, shape index: {}]
  %s1 = inlined_call_operand.hbm [shape: bf16[96,640], index: 1, kind: input, shape index: {}]
  %s2 = inlined_call_operand.vmem [shape: f32[1,640], index: 2, kind: input, shape index: {}]
  %s3 = inlined_call_operand.hbm [shape: f32[8,640], index: 3, kind: output, shape index: {}]
  %s4 = sld [smem:[#allocation0]]
  $region30: #{tpu_custom_call.1} parent=0
    _
  %s6 = ssub.s32 1, %s4
  %s7 = scalar_select 0, %s6, %s4
  $region1: #{tpu_custom_call.1} parent=0
    #allocation2 [shape = 'u8[4096]{0}', space=vmem, size = 0x1000, scoped, tag = 'input window, operand 0, single buffered']
    #allocation3 [shape = 's32[1]{0}', space=sflag, size = 0x4, scoped, tag = 'scoped memory for tpu_custom_call.1']
    #allocation4 [shape = 's32[1]{0}', space=sflag, size = 0x4, scoped, tag = 'scoped memory for tpu_custom_call.1']
    #allocation5 [shape = 'u8[122880]{0}', space=vmem, size = 0x1e000, scoped, tag = 'input window, operand 1, single buffered']
    #allocation6 [shape = 's32[1]{0}', space=sflag, size = 0x4, scoped, tag = 'scoped memory for tpu_custom_call.1']
    #allocation7 [shape = 'u8[20480]{0}', space=vmem, size = 0x5000, scoped, tag = 'output window, operand 0, single buffered']
    %8 = vsyncpa [#allocation3], 0
    %9 = vsyncpa [#allocation6], 0
    %10 = vsyncpa [#allocation4], 0
    // Predicated region
    $region2: #{tpu_custom_call.1} parent=1 // pred_check
      _
    $region3: #{tpu_custom_call.1} parent=1 // pred_check_branch
      %12 = sbr.rel (0) target = $region5
    $region4: #{tpu_custom_call.1} parent=1 // pred_region
      %s14 = ssub.s32 128, 128
      %15 = vsyncadd [#allocation3], %s14
      %s17 = sshll.u32 [#allocation2], 4
      %s18 = int_to_ptr.vmem [resolvable:$true] %s17
      %20 = dma.hbm_to_vmem [thread:$0]  %s0, 128, %s18, [#allocation3]
    $region5: #{tpu_custom_call.1} parent=1 // pred_fallthru
      _
    // Predicated region
    $region6: #{tpu_custom_call.1} parent=1 // pred_check
      _
    $region7: #{tpu_custom_call.1} parent=1 // pred_check_branch
      %22 = sbr.rel (0) target = $region9
    $region8: #{tpu_custom_call.1} parent=1 // pred_region
      %s24 = ssub.s32 3840, 3840
      %25 = vsyncadd [#allocation6], %s24
      %s26 = sshll.u32 [#allocation5], 4
      %s27 = int_to_ptr.vmem [resolvable:$true] %s26
      %32 = dma.hbm_to_vmem [thread:$0]  %s1, 3840, %s27, [#allocation6], 320, 320, 20
    $region9: #{tpu_custom_call.1} parent=1 // pred_fallthru
      _
    // Predicated region
    $region10: #{tpu_custom_call.1} parent=1 // pred_check
      _
    $region11: #{tpu_custom_call.1} parent=1 // pred_check_branch
      %34 = sbr.rel (0) target = $region13
    $region12: #{tpu_custom_call.1} parent=1 // pred_region
      _
    $region13: #{tpu_custom_call.1} parent=1 // pred_fallthru
      _
    // Predicated region
    $region14: #{tpu_custom_call.1} parent=1 // pred_check
      _
    $region15: #{tpu_custom_call.1} parent=1 // pred_check_branch
      %36 = sbr.rel (0) target = $region17
    $region16: #{tpu_custom_call.1} parent=1 // pred_region
      %37 = dma.done [#allocation3], 128
    $region17: #{tpu_custom_call.1} parent=1 // pred_fallthru
      _
    // Predicated region
    $region18: #{tpu_custom_call.1} parent=1 // pred_check
      _
    $region19: #{tpu_custom_call.1} parent=1 // pred_check_branch
      %39 = sbr.rel (0) target = $region21
    $region20: #{tpu_custom_call.1} parent=1 // pred_region
      %40 = dma.done [#allocation6], 3840
    $region21: #{tpu_custom_call.1} parent=1 // pred_fallthru
      _
    %v42 = vld [vmem:[#allocation5] sm:$0xff]
    %v43 = vld [vmem:[#allocation5 + $0x8] sm:$0xff]
    %v44 = vld [vmem:[#allocation5 + $0x10] sm:$0xf]
    %v45 = vld [vmem:[#allocation5 + $0x14] sm:$0xff]
    %v46 = vld [vmem:[#allocation5 + $0x1c] sm:$0xff]
    %v47 = vld [vmem:[#allocation5 + $0x24] sm:$0xf]
    %v48 = vld [vmem:[#allocation5 + $0x28] sm:$0xff]
    %v49 = vld [vmem:[#allocation5 + $0x30] sm:$0xff]
    %v50 = vld [vmem:[#allocation5 + $0x38] sm:$0xf]
    %v51 = vld [vmem:[#allocation5 + $0x3c] sm:$0xff]
    %v52 = vld [vmem:[#allocation5 + $0x44] sm:$0xff]
    %v53 = vld [vmem:[#allocation5 + $0x4c] sm:$0xf]
    %v54 = vld [vmem:[#allocation5 + $0x50] sm:$0xff]
    %v55 = vld [vmem:[#allocation5 + $0x58] sm:$0xff]
    %v56 = vld [vmem:[#allocation5 + $0x60] sm:$0xf]
    %v57 = vld [vmem:[#allocation5 + $0x64] sm:$0xff]
    %v58 = vld [vmem:[#allocation5 + $0x6c] sm:$0xff]
    %v59 = vld [vmem:[#allocation5 + $0x74] sm:$0xf]
    %v60 = vld [vmem:[#allocation5 + $0x78] sm:$0xff]
    %v61 = vld [vmem:[#allocation5 + $0x80] sm:$0xff]
    %v62 = vld [vmem:[#allocation5 + $0x88] sm:$0xf]
    %v63 = vld [vmem:[#allocation5 + $0x8c] sm:$0xff]
    %v64 = vld [vmem:[#allocation5 + $0x94] sm:$0xff]
    %v65 = vld [vmem:[#allocation5 + $0x9c] sm:$0xf]
    %v66 = vld [vmem:[#allocation5 + $0xa0] sm:$0xff]
    %v67 = vld [vmem:[#allocation5 + $0xa8] sm:$0xff]
    %v68 = vld [vmem:[#allocation5 + $0xb0] sm:$0xf]
    %v69 = vld [vmem:[#allocation5 + $0xb4] sm:$0xff]
    %v70 = vld [vmem:[#allocation5 + $0xbc] sm:$0xff]
    %v71 = vld [vmem:[#allocation5 + $0xc4] sm:$0xf]
    %v72 = vld [vmem:[#allocation5 + $0xc8] sm:$0xff]
    %v73 = vld [vmem:[#allocation5 + $0xd0] sm:$0xff]
    %v74 = vld [vmem:[#allocation5 + $0xd8] sm:$0xf]
    %v75 = vld [vmem:[#allocation5 + $0xdc] sm:$0xff]
    %v76 = vld [vmem:[#allocation5 + $0xe4] sm:$0xff]
    %v77 = vld [vmem:[#allocation5 + $0xec] sm:$0xf]
    %v78 = vld [vmem:[%s2] sm:$0x1f]
    %v79 = vld [vmem:[#allocation2] sm:$0xff]
    %v80 = vpack.c.bf16 %v79, %v79
    %v81 = vunpack.c.l.bf16 %v80
    %v82 = vsub.f32 %v79, %v81
    %v83 = vpack.c.bf16 %v82, %v82
    %v84 = vunpack.c.l.bf16 %v83
    %v85 = vsub.f32 %v82, %v84
    %v86 = vpack.c.bf16 %v85, %v85
    %88 = vrot.lane.b32.xlu0 %v83, 32
    %v89 = vpop.permute.xlu0 %88
    %91 = vrot.lane.b32.xlu0 %v86, 64
    %v92 = vpop.permute.xlu0 %91
    %vm93 = vcmask 261120
    %v96 = vsel %vm93, %v80, %v89
    %vm97 = vcmask 523264
    %v99 = vsel %vm97, %v96, %v92
    %v136 = vunpack.c.l.b16 %v42
    %v137 = vunpack.c.h.b16 %v42
    %v138 = vunpack.c.l.b16 %v43
    %v139 = vunpack.c.h.b16 %v43
    %v140 = vunpack.c.l.b16 %v44
    %v141 = vunpack.c.l.b16 %v45
    %v142 = vunpack.c.h.b16 %v45
    %v143 = vunpack.c.l.b16 %v46
    %v144 = vunpack.c.h.b16 %v46
    %v145 = vunpack.c.l.b16 %v47
    %v146 = vunpack.c.l.b16 %v48
    %v147 = vunpack.c.h.b16 %v48
    %v148 = vunpack.c.l.b16 %v49
    %v149 = vunpack.c.h.b16 %v49
    %v150 = vunpack.c.l.b16 %v50
    %v151 = vunpack.c.l.b16 %v51
    %v152 = vunpack.c.h.b16 %v51
    %v153 = vunpack.c.l.b16 %v52
    %v154 = vunpack.c.h.b16 %v52
    %v155 = vunpack.c.l.b16 %v53
    %v156 = vunpack.c.l.b16 %v54
    %v157 = vunpack.c.h.b16 %v54
    %v158 = vunpack.c.l.b16 %v55
    %v159 = vunpack.c.h.b16 %v55
    %v160 = vunpack.c.l.b16 %v56
    %v161 = vunpack.c.l.b16 %v57
    %v162 = vunpack.c.h.b16 %v57
    %v163 = vunpack.c.l.b16 %v58
    %v164 = vunpack.c.h.b16 %v58
    %v165 = vunpack.c.l.b16 %v59
    %v166 = vunpack.c.l.b16 %v60
    %v167 = vunpack.c.h.b16 %v60
    %v168 = vunpack.c.l.b16 %v61
    %v169 = vunpack.c.h.b16 %v61
    %v170 = vunpack.c.l.b16 %v62
    %v171 = vunpack.c.l.b16 %v63
    %v172 = vunpack.c.h.b16 %v63
    %v173 = vunpack.c.l.b16 %v64
    %v174 = vunpack.c.h.b16 %v64
    %v175 = vunpack.c.l.b16 %v65
    %v176 = vunpack.c.l.b16 %v66
    %v177 = vunpack.c.h.b16 %v66
    %v178 = vunpack.c.l.b16 %v67
    %v179 = vunpack.c.h.b16 %v67
    %v180 = vunpack.c.l.b16 %v68
    %v181 = vunpack.c.l.b16 %v69
    %v182 = vunpack.c.h.b16 %v69
    %v183 = vunpack.c.l.b16 %v70
    %v184 = vunpack.c.h.b16 %v70
    %v185 = vunpack.c.l.b16 %v71
    %v186 = vunpack.c.l.b16 %v72
    %v187 = vunpack.c.h.b16 %v72
    %v188 = vunpack.c.l.b16 %v73
    %v189 = vunpack.c.h.b16 %v73
    %v190 = vunpack.c.l.b16 %v74
    %v191 = vunpack.c.l.b16 %v75
    %v192 = vunpack.c.h.b16 %v75
    %v193 = vunpack.c.l.b16 %v76
    %v194 = vunpack.c.h.b16 %v76
    %v195 = vunpack.c.l.b16 %v77
    %v196 = vpack.c.b16 %v141, %v136
    %v197 = vpack.c.b16 %v142, %v137
    %v198 = vpack.c.b16 %v143, %v138
    %v199 = vpack.c.b16 %v144, %v139
    %v200 = vpack.c.b16 %v145, %v140
    %v201 = vpack.c.b16 %v151, %v146
    %v202 = vpack.c.b16 %v152, %v147
    %v203 = vpack.c.b16 %v153, %v148
    %v204 = vpack.c.b16 %v154, %v149
    %v205 = vpack.c.b16 %v155, %v150
    %v206 = vpack.c.b16 %v161, %v156
    %v207 = vpack.c.b16 %v162, %v157
    %v208 = vpack.c.b16 %v163, %v158
    %v209 = vpack.c.b16 %v164, %v159
    %v210 = vpack.c.b16 %v165, %v160
    %v211 = vpack.c.b16 %v171, %v166
    %v212 = vpack.c.b16 %v172, %v167
    %v213 = vpack.c.b16 %v173, %v168
    %v214 = vpack.c.b16 %v174, %v169
    %v215 = vpack.c.b16 %v175, %v170
    %v216 = vpack.c.b16 %v181, %v176
    %v217 = vpack.c.b16 %v182, %v177
    %v218 = vpack.c.b16 %v183, %v178
    %v219 = vpack.c.b16 %v184, %v179
    %v220 = vpack.c.b16 %v185, %v180
    %v221 = vpack.c.b16 %v191, %v186
    %v222 = vpack.c.b16 %v192, %v187
    %v223 = vpack.c.b16 %v193, %v188
    %v224 = vpack.c.b16 %v194, %v189
    %v225 = vpack.c.b16 %v195, %v190
    %vm256 = vcmask 785408
    %v257 = vsel %vm256, %v99, 0
    %259 = vmatprep.subr.bf16.mxu0 %v197
    %260 = vmatpush1.bf16.msra.mxu0 %v196
    %261 = vmatprep.subr.bf16.mxu0 %v202
    %262 = vmatpush1.bf16.msra.mxu0 %v201
    %263 = vmatprep.subr.bf16.mxu0 %v207
    %264 = vmatpush1.bf16.msra.mxu0 %v206
    %265 = vmatprep.subr.bf16.mxu0 %v212
    %266 = vmatpush1.bf16.msra.mxu0 %v211
    %267 = vmatprep.subr.bf16.mxu0 %v217
    %268 = vmatpush1.bf16.msra.mxu0 %v216
    %269 = vmatprep.subr.bf16.mxu0 %v222
    %270 = vmatpush1.bf16.msra.mxu0 %v221
    %271 = vmatprep.subr.bf16.mxu0 0
    %272 = vmatpush1.bf16.msra.mxu0 0
    %273 = vmatprep.subr.bf16.mxu0 0
    %274 = vmatpush1.bf16.msra.mxu0 0
    %275 = vmatprep.subr.bf16.mxu0 0
    %276 = vmatpush1.bf16.msra.mxu0 0
    %277 = vmatprep.subr.bf16.mxu0 0
    %278 = vmatpush1.bf16.msra.mxu0 0
    %279 = vmatprep.subr.bf16.mxu0 0
    %280 = vmatpush1.bf16.msra.mxu0 0
    %281 = vmatprep.subr.bf16.mxu0 0
    %282 = vmatpush1.bf16.msra.mxu0 0
    %283 = vmatprep.subr.bf16.mxu0 0
    %284 = vmatpush1.bf16.msra.mxu0 0
    %285 = vmatprep.subr.bf16.mxu0 0
    %286 = vmatpush1.bf16.msra.mxu0 0
    %287 = vmatprep.subr.bf16.mxu0 0
    %288 = vmatpush1.bf16.msra.mxu0 0
    %289 = vmatprep.subr.bf16.mxu0 0
    %290 = vmatpush1.bf16.msra.mxu0 0
    %291 = vmatprep.mubr.bf16.mxu0 0
    %292 = vmatmul.mubr.bf16.gmra.mrb[0].mxu0 %v257
    %v293 = vpop.f32.mrb[0].mxu0
    %v294 = vadd.f32 0.0, %v293
    %v295 = vpop.f32.mrb[0].mxu0
    %v296 = vadd.f32 0.0, %v295
    %v297 = vpop.f32.mrb[0].mxu0
    %v298 = vpop.f32.mrb[0].mxu0
    %299 = vdwg.mxu0
    %300 = vmatprep.subr.bf16.mxu0 %v199
    %301 = vmatpush1.bf16.msra.mxu0 %v198
    %302 = vmatprep.subr.bf16.mxu0 %v204
    %303 = vmatpush1.bf16.msra.mxu0 %v203
    %304 = vmatprep.subr.bf16.mxu0 %v209
    %305 = vmatpush1.bf16.msra.mxu0 %v208
    %306 = vmatprep.subr.bf16.mxu0 %v214
    %307 = vmatpush1.bf16.msra.mxu0 %v213
    %308 = vmatprep.subr.bf16.mxu0 %v219
    %309 = vmatpush1.bf16.msra.mxu0 %v218
    %310 = vmatprep.subr.bf16.mxu0 %v224
    %311 = vmatpush1.bf16.msra.mxu0 %v223
    %312 = vmatprep.subr.bf16.mxu0 0
    %313 = vmatpush1.bf16.msra.mxu0 0
    %314 = vmatprep.subr.bf16.mxu0 0
    %315 = vmatpush1.bf16.msra.mxu0 0
    %316 = vmatprep.subr.bf16.mxu0 0
    %317 = vmatpush1.bf16.msra.mxu0 0
    %318 = vmatprep.subr.bf16.mxu0 0
    %319 = vmatpush1.bf16.msra.mxu0 0
    %320 = vmatprep.subr.bf16.mxu0 0
    %321 = vmatpush1.bf16.msra.mxu0 0
    %322 = vmatprep.subr.bf16.mxu0 0
    %323 = vmatpush1.bf16.msra.mxu0 0
    %324 = vmatprep.subr.bf16.mxu0 0
    %325 = vmatpush1.bf16.msra.mxu0 0
    %326 = vmatprep.subr.bf16.mxu0 0
    %327 = vmatpush1.bf16.msra.mxu0 0
    %328 = vmatprep.subr.bf16.mxu0 0
    %329 = vmatpush1.bf16.msra.mxu0 0
    %330 = vmatprep.subr.bf16.mxu0 0
    %331 = vmatpush1.bf16.msra.mxu0 0
    %332 = vmatprep.mubr.bf16.mxu0 0
    %333 = vmatmul.mubr.bf16.gmra.mrb[0].mxu0 %v257
    %v334 = vpop.f32.mrb[0].mxu0
    %v335 = vadd.f32 0.0, %v334
    %v336 = vpop.f32.mrb[0].mxu0
    %v337 = vadd.f32 0.0, %v336
    %v338 = vpop.f32.mrb[0].mxu0
    %v339 = vpop.f32.mrb[0].mxu0
    %340 = vdwg.mxu0
    %341 = vmatprep.subr.bf16.mxu0 0
    %342 = vmatpush1.bf16.msra.mxu0 %v200
    %343 = vmatprep.subr.bf16.mxu0 0
    %344 = vmatpush1.bf16.msra.mxu0 %v205
    %345 = vmatprep.subr.bf16.mxu0 0
    %346 = vmatpush1.bf16.msra.mxu0 %v210
    %347 = vmatprep.subr.bf16.mxu0 0
    %348 = vmatpush1.bf16.msra.mxu0 %v215
    %349 = vmatprep.subr.bf16.mxu0 0
    %350 = vmatpush1.bf16.msra.mxu0 %v220
    %351 = vmatprep.subr.bf16.mxu0 0
    %352 = vmatpush1.bf16.msra.mxu0 %v225
    %353 = vmatprep.subr.bf16.mxu0 0
    %354 = vmatpush1.bf16.msra.mxu0 0
    %355 = vmatprep.subr.bf16.mxu0 0
    %356 = vmatpush1.bf16.msra.mxu0 0
    %357 = vmatprep.subr.bf16.mxu0 0
    %358 = vmatpush1.bf16.msra.mxu0 0
    %359 = vmatprep.subr.bf16.mxu0 0
    %360 = vmatpush1.bf16.msra.mxu0 0
    %361 = vmatprep.subr.bf16.mxu0 0
    %362 = vmatpush1.bf16.msra.mxu0 0
    %363 = vmatprep.subr.bf16.mxu0 0
    %364 = vmatpush1.bf16.msra.mxu0 0
    %365 = vmatprep.subr.bf16.mxu0 0
    %366 = vmatpush1.bf16.msra.mxu0 0
    %367 = vmatprep.subr.bf16.mxu0 0
    %368 = vmatpush1.bf16.msra.mxu0 0
    %369 = vmatprep.subr.bf16.mxu0 0
    %370 = vmatpush1.bf16.msra.mxu0 0
    %371 = vmatprep.subr.bf16.mxu0 0
    %372 = vmatpush1.bf16.msra.mxu0 0
    %373 = vmatprep.mubr.bf16.mxu0 0
    %374 = vmatmul.mubr.bf16.gmra.mrb[0].mxu0 %v257
    %v375 = vpop.f32.mrb[0].mxu0
    %v376 = vadd.f32 0.0, %v375
    %v377 = vpop.f32.mrb[0].mxu0
    %v378 = vpop.f32.mrb[0].mxu0
    %v379 = vpop.f32.mrb[0].mxu0
    %380 = vdwg.mxu0
    %v382 = vlaneseq
    %v383 = vshrl.u32 %v382, 7
    %v384 = vsub.s32 0, %v383
    %v385 = vrot.slane %v78, %v384
    %v386 = vlaneseq
    %v387 = vshrl.u32 %v386, 7
    %v388 = vsub.s32 1, %v387
    %v389 = vrot.slane %v78, %v388
    %v390 = vlaneseq
    %v391 = vshrl.u32 %v390, 7
    %v392 = vsub.s32 2, %v391
    %v393 = vrot.slane %v78, %v392
    %v394 = vlaneseq
    %v395 = vshrl.u32 %v394, 7
    %v396 = vsub.s32 3, %v395
    %v397 = vrot.slane %v78, %v396
    %v398 = vlaneseq
    %v399 = vshrl.u32 %v398, 7
    %v400 = vsub.s32 4, %v399
    %v401 = vrot.slane %v78, %v400
    %v407 = vsub.f32 %v294, %v385
    %v408 = vsub.f32 %v296, %v389
    %v409 = vsub.f32 %v335, %v393
    %v410 = vsub.f32 %v337, %v397
    %v411 = vsub.f32 %v376, %v401
    %v412 = vand.u32 2147483647, %v407
    %v413 = vand.u32 2147483647, %v408
    %v414 = vand.u32 2147483647, %v409
    %v415 = vand.u32 2147483647, %v410
    %v416 = vand.u32 2147483647, %v411
    %v417 = vsub.f32 1.1, %v412
    %v418 = vsub.f32 1.1, %v413
    %v419 = vsub.f32 1.1, %v414
    %v420 = vsub.f32 1.1, %v415
    %v421 = vsub.f32 1.1, %v416
    %v422 = vmin.f32 %v417, 1.0
    %v423 = vmin.f32 %v418, 1.0
    %v424 = vmin.f32 %v419, 1.0
    %v425 = vmin.f32 %v420, 1.0
    %v426 = vmin.f32 %v421, 1.0
    %vm427 = vcmp.le.f32.partialorder %v412, 0.3
    %vm428 = vcmp.le.f32.partialorder %v413, 0.3
    %vm429 = vcmp.le.f32.partialorder %v414, 0.3
    %vm430 = vcmp.le.f32.partialorder %v415, 0.3
    %vm431 = vcmp.le.f32.partialorder %v416, 0.3
    %v432 = vsel %vm427, %v422, 0.0
    %v433 = vsel %vm428, %v423, 0.0
    %v434 = vsel %vm429, %v424, 0.0
    %v435 = vsel %vm430, %v425, 0.0
    %v436 = vsel %vm431, %v426, 0.0
    %437 = vst [vmem:[#allocation7] sm:$0xff] %v432
    %438 = vst [vmem:[#allocation7 + $0x8] sm:$0xff] %v433
    %439 = vst [vmem:[#allocation7 + $0x10] sm:$0xff] %v434
    %440 = vst [vmem:[#allocation7 + $0x18] sm:$0xff] %v435
    %441 = vst [vmem:[#allocation7 + $0x20] sm:$0xff] %v436
    // Predicated region
    $region22: #{tpu_custom_call.1} parent=1 // pred_check
      _
    $region23: #{tpu_custom_call.1} parent=1 // pred_check_branch
      %443 = sbr.rel (0) target = $region25
    $region24: #{tpu_custom_call.1} parent=1 // pred_region
      %s445 = ssub.s32 640, 640
      %446 = vsyncadd [#allocation4], %s445
      %s448 = sshll.u32 [#allocation7], 4
      %s449 = int_to_ptr.vmem [resolvable:$true] %s448
      %451 = dma.vmem_to_hbm [thread:$0]  %s449, 640, %s3, [#allocation4]
    $region25: #{tpu_custom_call.1} parent=1 // pred_fallthru
      _
    // Predicated region
    $region26: #{tpu_custom_call.1} parent=1 // pred_check
      _
    $region27: #{tpu_custom_call.1} parent=1 // pred_check_branch
      %453 = sbr.rel (0) target = $region29
    $region28: #{tpu_custom_call.1} parent=1 // pred_region
      %454 = dma.done [#allocation4], 640
    $region29: #{tpu_custom_call.1} parent=1 // pred_fallthru
      _
    %455 = vsyncpa [#allocation3], 1
    %456 = vsyncpa [#allocation6], 1
    %457 = vsyncpa [#allocation4], 1

</llo_original>
